<compile_context>
chip_gen: v7x
topology: tpu7x:2x2x1
jax: 0.10.0
libtpu: 0.0.40
codegen_flags: <defaults>
</compile_context>

<pallas_src>
import functools

import jax
import jax.numpy as jnp
from jax.experimental import pallas as pl
from jax.experimental.pallas import tpu as pltpu


def _proj_kernel(x_ref, w_ref, o_ref, *, mxu_dtype):
    a = x_ref[...]
    w = w_ref[...]
    if mxu_dtype is not None:
        # In-kernel cast: HBM traffic stays at the source dtype while the MXU
        # runs single-pass bf16; accumulation is always f32.
        a = a.astype(mxu_dtype)
        w = w.astype(mxu_dtype)
    o_ref[...] = jnp.dot(a, w, preferred_element_type=jnp.float32).astype(o_ref.dtype)


def prepare_patch_embed_weight(weight, in_chans, patch_size, *, dtype=None):
    """One-time re-layout of the nn.Linear weight (hoisted out of the forward).

    (embed_dim, patch_size*in_chans) -> (K, N) with W'[t*C + c, n] = W[n, c*P + t]
    so the free (B,T,C)->(B*nP, P*C) activation reshape matches PyTorch's
    channel-major patch ordering.  Call once at parameter load, not per forward.
    """
    N, K = weight.shape
    assert K == in_chans * patch_size, "weight must be (embed_dim, patch_size*in_chans)"
    wt = jnp.transpose(weight.reshape(N, in_chans, patch_size), (2, 1, 0)).reshape(K, N)
    if dtype is not None:
        wt = wt.astype(dtype)
    return wt


def _round_up(v, m):
    return ((v + m - 1) // m) * m


def patch_embed_1d(x, wt, patch_size, *, tm=512, tn=1024,
                   mxu_dtype=None, out_dtype=None):
    """Pallas PatchEmbed1D forward.

    Args:
      x: (B, T, C) input sequence (any float dtype; read as-is from HBM).
      wt: (K=patch_size*C, N=embed_dim) weight from prepare_patch_embed_weight.
      patch_size: patch length along T.
      tm: M-tile upper bound (rows of B*num_patches per grid step).
      tn: N-tile upper bound; N is tiled only when larger than this.
      mxu_dtype: optional dtype (e.g. jnp.bfloat16) the operands are cast to
        *inside the kernel* before the matmul (single-pass MXU, no extra HBM).
      out_dtype: output/store dtype (default x.dtype); bf16 halves write traffic.

    Returns:
      (B, num_patches, embed_dim) in out_dtype.
    """
    B, T, C = x.shape
    assert T % patch_size == 0, "Sequence length must be divisible by patch size."
    num_patches = T // patch_size
    K, N = wt.shape
    assert K == patch_size * C, "wt must be (patch_size*in_chans, embed_dim)"
    if out_dtype is None:
        out_dtype = x.dtype

    # --- activation: FREE contiguous reshape, no transpose, no dtype cast ---
    M = B * num_patches
    xp = x.reshape(M, K)

    in_b = jnp.dtype(x.dtype).itemsize
    w_b = jnp.dtype(wt.dtype).itemsize
    out_b = jnp.dtype(out_dtype).itemsize

    # Row alignment: 16 for 16-bit tiles (sublane packing), else 8.
    row_align = 16 if min(in_b, out_b) == 2 else 8

    # --- M tiling: aim for grid_m >= 2 so both v7x TensorCores get work ---
    tm = max(row_align, (tm // row_align) * row_align)
    if M <= row_align:
        tm_eff = M                       # block == full dim (always legal)
    else:
        half = _round_up(-(-M // 2), row_align)
        tm_eff = min(tm, half)
    grid_m = pl.cdiv(M, tm_eff)

    # --- N tiling: full-N block (no padding) unless N is large ---
    tn = max(128, (tn // 128) * 128)
    tn_eff = N if N <= tn else tn
    grid_n = pl.cdiv(N, tn_eff)

    # Weight buffering: resident single buffer when not tiled along N.
    w_bufs = 1 if grid_n == 1 else 2

    # Explicit scoped-VMEM budget (defaults: 16 MiB v5e / 32 MiB v6e,v7x).
    vmem_needed = (2 * tm_eff * K * in_b
                   + w_bufs * K * tn_eff * w_b
                   + 2 * tm_eff * tn_eff * out_b)
    vmem_limit = int(min(max(vmem_needed + (4 << 20), 32 << 20), 100 << 20))

    cost = pl.CostEstimate(
        flops=2 * M * K * N,
        transcendentals=0,
        bytes_accessed=M * K * in_b + K * N * w_b + M * N * out_b,
    )

    kernel = functools.partial(_proj_kernel, mxu_dtype=mxu_dtype)

    def _call(w_pipeline_mode):
        w_kwargs = {} if w_pipeline_mode is None else {"pipeline_mode": w_pipeline_mode}
        return pl.pallas_call(
            kernel,
            out_shape=jax.ShapeDtypeStruct((M, N), out_dtype),
            grid_spec=pltpu.PrefetchScalarGridSpec(
                num_scalar_prefetch=0,
                grid=(grid_m, grid_n),
                in_specs=[
                    # Activation tile marches down M; constant across the N axis.
                    pl.BlockSpec((tm_eff, K), lambda i, j: (i, 0)),
                    # Weight tile: constant across M; varies only with N tiles.
                    pl.BlockSpec((K, tn_eff), lambda i, j: (0, j), **w_kwargs),
                ],
                out_specs=pl.BlockSpec((tm_eff, tn_eff), lambda i, j: (i, j)),
            ),
            compiler_params=pltpu.CompilerParams(
                dimension_semantics=("parallel", "parallel"),
                vmem_limit_bytes=vmem_limit,
            ),
            cost_estimate=cost,
        )(xp, wt)

    if grid_n == 1:
        try:
            # Weight resident in VMEM with a single buffer (saves K*N*itemsize).
            out = _call(pl.Buffered(1))
        except Exception:
            # Fallback if this JAX build lacks BlockSpec.pipeline_mode support;
            # the constant index_map still avoids re-DMA of the weight.
            out = _call(None)
    else:
        out = _call(None)

    return out.reshape(B, num_patches, N)


def _reference(x, weight, patch_size):
    # Pure-JAX reproduction of PyTorch's permute/unfold/permute/reshape + Linear.
    B, T, C = x.shape
    nP = T // patch_size
    xp = jnp.transpose(x.reshape(B, nP, patch_size, C), (0, 1, 3, 2))
    xp = xp.reshape(B, nP, C * patch_size)
    return jnp.einsum("bpk,nk->bpn", xp, weight)


if __name__ == "__main__":
    key = jax.random.PRNGKey(0)

    # --- Case 1: small shapes consistent with the module ---
    B, T, C = 2, 16, 4            # batch, seq_len, in_chans
    patch_size, embed_dim = 4, 32
    num_patches = T // patch_size

    kx, kw, kx2 = jax.random.split(key, 3)
    x = jax.random.normal(kx, (B, T, C), dtype=jnp.float32)
    # nn.Linear(patch_size*in_chans, embed_dim, bias=False) weight layout.
    weight = jax.random.normal(kw, (embed_dim, patch_size * C), dtype=jnp.float32) * 0.02

    # One-time weight re-layout (hoisted out of the forward path).
    wt = prepare_patch_embed_weight(weight, C, patch_size)

    ref = _reference(x, weight, patch_size)

    # Strict f32 path.
    out = jax.block_until_ready(patch_embed_1d(x, wt, patch_size))
    assert out.shape == (B, num_patches, embed_dim), out.shape
    assert jnp.allclose(out, ref, atol=1e-5, rtol=1e-5)

    # bf16 MXU operands + bf16 store (HBM-traffic optimization; f32 accumulation).
    out_bf16 = jax.block_until_ready(
        patch_embed_1d(x, wt, patch_size,
                       mxu_dtype=jnp.bfloat16, out_dtype=jnp.bfloat16))
    assert out_bf16.dtype == jnp.bfloat16
    assert jnp.allclose(out_bf16.astype(jnp.float32), ref, atol=2e-2, rtol=2e-2)

    # --- Case 2: exercises grid_m >= 2 (two M tiles) and non-128-multiple N ---
    B2, T2, C2, P2, E2 = 4, 64, 4, 4, 48
    x2 = jax.random.normal(kx2, (B2, T2, C2), dtype=jnp.float32)
    w2 = jax.random.normal(kw, (E2, P2 * C2), dtype=jnp.float32) * 0.02
    wt2 = prepare_patch_embed_weight(w2, C2, P2)
    ref2 = _reference(x2, w2, P2)
    out2 = jax.block_until_ready(patch_embed_1d(x2, wt2, P2))
    assert out2.shape == (B2, T2 // P2, E2), out2.shape
    assert jnp.allclose(out2, ref2, atol=1e-5, rtol=1e-5)

    print("KERNEL_OK")
</pallas_src>

<mosaic_0001>
module attributes {stable_mosaic.version = 11 : i64} {
  func.func @_proj_kernel(%arg0: i32, %arg1: i32, %arg2: memref<8x16xf32, #tpu.memory_space<vmem>>, %arg3: memref<16x32xf32, #tpu.memory_space<vmem>>, %arg4: memref<8x32xf32, #tpu.memory_space<vmem>>) attributes {dimension_semantics = [#tpu.dimension_semantics<parallel>, #tpu.dimension_semantics<parallel>], iteration_bounds = array<i64: 1, 1>, scalar_prefetch = 0 : i64, scratch_operands = 0 : i64, tpu.core_type = #tpu.core_type<tc>, window_params = [{transform_indices = @transform_0, window_bounds = array<i64: 8, 16>}, {pipeline_mode = #tpu.pipeline_mode<synchronous>, transform_indices = @transform_1, window_bounds = array<i64: 16, 32>}, {transform_indices = @transform_2, window_bounds = array<i64: 8, 32>}]} {
    %c0 = arith.constant 0 : index
    %c0_0 = arith.constant 0 : index
    %0 = vector.load %arg2[%c0, %c0_0] : memref<8x16xf32, #tpu.memory_space<vmem>>, vector<8x16xf32>
    %c0_1 = arith.constant 0 : index
    %c0_2 = arith.constant 0 : index
    %1 = vector.load %arg3[%c0_1, %c0_2] : memref<16x32xf32, #tpu.memory_space<vmem>>, vector<16x32xf32>
    %cst = arith.constant dense<0.000000e+00> : vector<8x32xf32>
    %2 = tpu.matmul %0, %1, %cst {dimension_numbers = #tpu.dot_dimension_numbers<[1], [0], [0], [1], [0, 0, 1, 1], [], []>} : vector<8x16xf32>, vector<16x32xf32>, vector<8x32xf32> -> vector<8x32xf32>
    %c0_3 = arith.constant 0 : index
    %c0_4 = arith.constant 0 : index
    %3 = vector.load %arg4[%c0_3, %c0_4] : memref<8x32xf32, #tpu.memory_space<vmem>>, vector<8x32xf32>
    tpu.vector_store %arg4[%c0_3, %c0_4], %2 {strides = array<i32>} : memref<8x32xf32, #tpu.memory_space<vmem>>, vector<8x32xf32>,
    return
  }
  func.func @transform_0(%arg0: i32, %arg1: i32) -> (i32, i32) {
    %c0_i32 = arith.constant 0 : i32
    %c0_i32_0 = arith.constant 0 : i32
    return %arg0, %c0_i32 : i32, i32
  }
  func.func @transform_1(%arg0: i32, %arg1: i32) -> (i32, i32) {
    %c0_i32 = arith.constant 0 : i32
    %c0_i32_0 = arith.constant 0 : i32
    return %c0_i32, %arg1 : i32, i32
  }
  func.func @transform_2(%arg0: i32, %arg1: i32) -> (i32, i32) {
    %c0_i32 = arith.constant 0 : i32
    return %arg0, %arg1 : i32, i32
  }
}

module attributes {stable_mosaic.version = 11 : i64} {
  func.func @_proj_kernel(%arg0: i32, %arg1: i32, %arg2: memref<8x16xf32, #tpu.memory_space<vmem>>, %arg3: memref<16x32xf32, #tpu.memory_space<vmem>>, %arg4: memref<8x32xf32, #tpu.memory_space<vmem>>) attributes {dimension_semantics = [#tpu.dimension_semantics<parallel>, #tpu.dimension_semantics<parallel>], iteration_bounds = array<i64: 1, 1>, scalar_prefetch = 0 : i64, scratch_operands = 0 : i64, tpu.core_type = #tpu.core_type<tc>, window_params = [{transform_indices = @transform_0, window_bounds = array<i64: 8, 16>}, {transform_indices = @transform_1, window_bounds = array<i64: 16, 32>}, {transform_indices = @transform_2, window_bounds = array<i64: 8, 32>}]} {
    %c0 = arith.constant 0 : index
    %c0_0 = arith.constant 0 : index
    %0 = vector.load %arg2[%c0, %c0_0] : memref<8x16xf32, #tpu.memory_space<vmem>>, vector<8x16xf32>
    %c0_1 = arith.constant 0 : index
    %c0_2 = arith.constant 0 : index
    %1 = vector.load %arg3[%c0_1, %c0_2] : memref<16x32xf32, #tpu.memory_space<vmem>>, vector<16x32xf32>
    %cst = arith.constant dense<0.000000e+00> : vector<8x32xf32>
    %2 = tpu.matmul %0, %1, %cst {dimension_numbers = #tpu.dot_dimension_numbers<[1], [0], [0], [1], [0, 0, 1, 1], [], []>} : vector<8x16xf32>, vector<16x32xf32>, vector<8x32xf32> -> vector<8x32xf32>
    %c0_3 = arith.constant 0 : index
    %c0_4 = arith.constant 0 : index
    %3 = vector.load %arg4[%c0_3, %c0_4] : memref<8x32xf32, #tpu.memory_space<vmem>>, vector<8x32xf32>
    tpu.vector_store %arg4[%c0_3, %c0_4], %2 {strides = array<i32>} : memref<8x32xf32, #tpu.memory_space<vmem>>, vector<8x32xf32>,
    return
  }
  func.func @transform_0(%arg0: i32, %arg1: i32) -> (i32, i32) {
    %c0_i32 = arith.constant 0 : i32
    %c0_i32_0 = arith.constant 0 : i32
    return %arg0, %c0_i32 : i32, i32
  }
  func.func @transform_1(%arg0: i32, %arg1: i32) -> (i32, i32) {
    %c0_i32 = arith.constant 0 : i32
    %c0_i32_0 = arith.constant 0 : i32
    return %c0_i32, %arg1 : i32, i32
  }
  func.func @transform_2(%arg0: i32, %arg1: i32) -> (i32, i32) {
    %c0_i32 = arith.constant 0 : i32
    return %arg0, %arg1 : i32, i32
  }
}

</mosaic_0001>

<llo_original>
// kernel: tpu_custom_call.1
$region0: #{tpu_custom_call.1}
  #allocation0 [shape = 'u32[]', space=smem, size = 0x4, offset = 0x4, fixed_abs, tag = 'smem constant byte address 0x4 - core index']
  #allocation1 [shape = 'u32[144,128]{1,0:T(1,128)}', space=vmem, size = 0x12000, scoped, tag = 'internal scratch']
  %s0 = inlined_call_operand.hbm [shape: f32[8,16], index: 0, kind: input, shape index: {}]
  %s1 = inlined_call_operand.hbm [shape: f32[16,32], index: 1, kind: input, shape index: {}]
  %s2 = inlined_call_operand.hbm [shape: f32[8,32], index: 2, kind: output, shape index: {}]
  %s3 = sld [smem:[#allocation0]]
  $region26: #{tpu_custom_call.1} parent=0
    _
  %s5 = ssub.s32 1, %s3
  %s6 = scalar_select 0, %s5, %s3
  $region1: #{tpu_custom_call.1} parent=0
    #allocation2 [shape = 'u8[4096]{0}', space=vmem, size = 0x1000, scoped, tag = 'input window, operand 0, single buffered']
    #allocation3 [shape = 's32[1]{0}', space=sflag, size = 0x4, scoped, tag = 'scoped memory for tpu_custom_call.1']
    #allocation4 [shape = 's32[1]{0}', space=sflag, size = 0x4, scoped, tag = 'scoped memory for tpu_custom_call.1']
    #allocation5 [shape = 'u8[8192]{0}', space=vmem, size = 0x2000, scoped, tag = 'input window, operand 1, single buffered']
    #allocation6 [shape = 's32[1]{0}', space=sflag, size = 0x4, scoped, tag = 'scoped memory for tpu_custom_call.1']
    #allocation7 [shape = 'u8[4096]{0}', space=vmem, size = 0x1000, scoped, tag = 'output window, operand 0, single buffered']
    %7 = vsyncpa [#allocation3], 0
    %8 = vsyncpa [#allocation6], 0
    %9 = vsyncpa [#allocation4], 0
    // Predicated region
    $region2: #{tpu_custom_call.1} parent=1 // pred_check
      _
    $region3: #{tpu_custom_call.1} parent=1 // pred_check_branch
      %11 = sbr.rel (0) target = $region5
    $region4: #{tpu_custom_call.1} parent=1 // pred_region
      %s13 = ssub.s32 128, 128
      %14 = vsyncadd [#allocation3], %s13
      %s16 = sshll.u32 [#allocation2], 4
      %s17 = int_to_ptr.vmem [resolvable:$true] %s16
      %19 = dma.hbm_to_vmem [thread:$0]  %s0, 128, %s17, [#allocation3]
    $region5: #{tpu_custom_call.1} parent=1 // pred_fallthru
      _
    // Predicated region
    $region6: #{tpu_custom_call.1} parent=1 // pred_check
      _
    $region7: #{tpu_custom_call.1} parent=1 // pred_check_branch
      %21 = sbr.rel (0) target = $region9
    $region8: #{tpu_custom_call.1} parent=1 // pred_region
      %s23 = ssub.s32 256, 256
      %24 = vsyncadd [#allocation6], %s23
      %s25 = sshll.u32 [#allocation5], 4
      %s26 = int_to_ptr.vmem [resolvable:$true] %s25
      %31 = dma.hbm_to_vmem [thread:$0]  %s1, 256, %s26, [#allocation6], 128, 128, 8
    $region9: #{tpu_custom_call.1} parent=1 // pred_fallthru
      _
    // Predicated region
    $region10: #{tpu_custom_call.1} parent=1 // pred_check
      _
    $region11: #{tpu_custom_call.1} parent=1 // pred_check_branch
      %33 = sbr.rel (0) target = $region13
    $region12: #{tpu_custom_call.1} parent=1 // pred_region
      %34 = dma.done [#allocation3], 128
    $region13: #{tpu_custom_call.1} parent=1 // pred_fallthru
      _
    // Predicated region
    $region14: #{tpu_custom_call.1} parent=1 // pred_check
      _
    $region15: #{tpu_custom_call.1} parent=1 // pred_check_branch
      %36 = sbr.rel (0) target = $region17
    $region16: #{tpu_custom_call.1} parent=1 // pred_region
      %37 = dma.done [#allocation6], 256
    $region17: #{tpu_custom_call.1} parent=1 // pred_fallthru
      _
    %v38 = vld [vmem:[#allocation2] sm:$0xff]
    %v39 = vld [vmem:[#allocation5] sm:$0xff]
    %v40 = vld [vmem:[#allocation5 + $0x8] sm:$0xff]
    %vm41 = vcmask 130048
    %v43 = vsel %vm41, %v38, 0
    %45 = vmatprep.subr.mxu0 0.0
    %46 = vmatpush1.msra.mxu0 %v39
    %47 = vmatprep.subr.mxu0 0.0
    %48 = vmatpush1.msra.mxu0 %v40
    %49 = vmatprep.subr.mxu0 0.0
    %50 = vmatpush1.msra.mxu0 0.0
    %51 = vmatprep.subr.mxu0 0.0
    %52 = vmatpush1.msra.mxu0 0.0
    %53 = vmatprep.subr.mxu0 0.0
    %54 = vmatpush1.msra.mxu0 0.0
    %55 = vmatprep.subr.mxu0 0.0
    %56 = vmatpush1.msra.mxu0 0.0
    %57 = vmatprep.subr.mxu0 0.0
    %58 = vmatpush1.msra.mxu0 0.0
    %59 = vmatprep.subr.mxu0 0.0
    %60 = vmatpush1.msra.mxu0 0.0
    %61 = vmatprep.subr.mxu0 0.0
    %62 = vmatpush1.msra.mxu0 0.0
    %63 = vmatprep.subr.mxu0 0.0
    %64 = vmatpush1.msra.mxu0 0.0
    %65 = vmatprep.subr.mxu0 0.0
    %66 = vmatpush1.msra.mxu0 0.0
    %67 = vmatprep.subr.mxu0 0.0
    %68 = vmatpush1.msra.mxu0 0.0
    %69 = vmatprep.subr.mxu0 0.0
    %70 = vmatpush1.msra.mxu0 0.0
    %71 = vmatprep.subr.mxu0 0.0
    %72 = vmatpush1.msra.mxu0 0.0
    %73 = vmatprep.subr.mxu0 0.0
    %74 = vmatpush1.msra.mxu0 0.0
    %75 = vmatprep.subr.mxu0 0.0
    %76 = vmatpush1.msra.mxu0 0.0
    %77 = vmatprep.subr.mxu0 0.0
    %78 = vmatpush1.msra.mxu0 0.0
    %79 = vmatprep.subr.mxu0 0.0
    %80 = vmatpush1.msra.mxu0 0.0
    %81 = vmatprep.subr.mxu0 0.0
    %82 = vmatpush1.msra.mxu0 0.0
    %83 = vmatprep.subr.mxu0 0.0
    %84 = vmatpush1.msra.mxu0 0.0
    %85 = vmatprep.subr.mxu0 0.0
    %86 = vmatpush1.msra.mxu0 0.0
    %87 = vmatprep.subr.mxu0 0.0
    %88 = vmatpush1.msra.mxu0 0.0
    %89 = vmatprep.subr.mxu0 0.0
    %90 = vmatpush1.msra.mxu0 0.0
    %91 = vmatprep.subr.mxu0 0.0
    %92 = vmatpush1.msra.mxu0 0.0
    %93 = vmatprep.subr.mxu0 0.0
    %94 = vmatpush1.msra.mxu0 0.0
    %95 = vmatprep.subr.mxu0 0.0
    %96 = vmatpush1.msra.mxu0 0.0
    %97 = vmatprep.subr.mxu0 0.0
    %98 = vmatpush1.msra.mxu0 0.0
    %99 = vmatprep.subr.mxu0 0.0
    %100 = vmatpush1.msra.mxu0 0.0
    %101 = vmatprep.subr.mxu0 0.0
    %102 = vmatpush1.msra.mxu0 0.0
    %103 = vmatprep.subr.mxu0 0.0
    %104 = vmatpush1.msra.mxu0 0.0
    %105 = vmatprep.subr.mxu0 0.0
    %106 = vmatpush1.msra.mxu0 0.0
    %107 = vmatprep.subr.mxu0 0.0
    %108 = vmatpush1.msra.mxu0 0.0
    %109 = vmatprep.mubr.f32.mxu0 0.0
    %110 = vmatmul.mubr.f32.gmra.mrb[0].mxu0 %v43
    %v111 = vpop.f32.mrb[0].mxu0
    %v112 = vadd.f32 0.0, %v111
    %v113 = vpop.f32.mrb[0].mxu0
    %114 = vdwg.mxu0
    %vm115 = vcmask 261120
    %116 = vst.msk [vmem:[#allocation7] sm:$0xff] %vm115, %v112
    // Predicated region
    $region18: #{tpu_custom_call.1} parent=1 // pred_check
      _
    $region19: #{tpu_custom_call.1} parent=1 // pred_check_branch
      %118 = sbr.rel (0) target = $region21
    $region20: #{tpu_custom_call.1} parent=1 // pred_region
      %s120 = ssub.s32 128, 128
      %121 = vsyncadd [#allocation4], %s120
      %s123 = sshll.u32 [#allocation7], 4
      %s124 = int_to_ptr.vmem [resolvable:$true] %s123
      %126 = dma.vmem_to_hbm [thread:$0]  %s124, 128, %s2, [#allocation4]
    $region21: #{tpu_custom_call.1} parent=1 // pred_fallthru
      _
    // Predicated region
    $region22: #{tpu_custom_call.1} parent=1 // pred_check
      _
    $region23: #{tpu_custom_call.1} parent=1 // pred_check_branch
      %128 = sbr.rel (0) target = $region25
    $region24: #{tpu_custom_call.1} parent=1 // pred_region
      %129 = dma.done [#allocation4], 128
    $region25: #{tpu_custom_call.1} parent=1 // pred_fallthru
      _
    %130 = vsyncpa [#allocation3], 1
    %131 = vsyncpa [#allocation6], 1
    %132 = vsyncpa [#allocation4], 1

// kernel: tpu_custom_call.1
$region0: #{tpu_custom_call.1}
  #allocation0 [shape = 'u32[]', space=smem, size = 0x4, offset = 0x4, fixed_abs, tag = 'smem constant byte address 0x4 - core index']
  #allocation1 [shape = 'u32[144,128]{1,0:T(1,128)}', space=vmem, size = 0x12000, scoped, tag = 'internal scratch']
  %s0 = inlined_call_operand.hbm [shape: f32[8,16], index: 0, kind: input, shape index: {}]
  %s1 = inlined_call_operand.hbm [shape: f32[16,32], index: 1, kind: input, shape index: {}]
  %s2 = inlined_call_operand.hbm [shape: f32[8,32], index: 2, kind: output, shape index: {}]
  %s3 = sld [smem:[#allocation0]]
  $region26: #{tpu_custom_call.1} parent=0
    _
  %s5 = ssub.s32 1, %s3
  %s6 = scalar_select 0, %s5, %s3
  $region1: #{tpu_custom_call.1} parent=0
    #allocation2 [shape = 'u8[4096]{0}', space=vmem, size = 0x1000, scoped, tag = 'input window, operand 0, single buffered']
    #allocation3 [shape = 's32[1]{0}', space=sflag, size = 0x4, scoped, tag = 'scoped memory for tpu_custom_call.1']
    #allocation4 [shape = 's32[1]{0}', space=sflag, size = 0x4, scoped, tag = 'scoped memory for tpu_custom_call.1']
    #allocation5 [shape = 'u8[8192]{0}', space=vmem, size = 0x2000, scoped, tag = 'input window, operand 1, single buffered']
    #allocation6 [shape = 's32[1]{0}', space=sflag, size = 0x4, scoped, tag = 'scoped memory for tpu_custom_call.1']
    #allocation7 [shape = 'u8[4096]{0}', space=vmem, size = 0x1000, scoped, tag = 'output window, operand 0, single buffered']
    %7 = vsyncpa [#allocation3], 0
    %8 = vsyncpa [#allocation6], 0
    %9 = vsyncpa [#allocation4], 0
    // Predicated region
    $region2: #{tpu_custom_call.1} parent=1 // pred_check
      _
    $region3: #{tpu_custom_call.1} parent=1 // pred_check_branch
      %11 = sbr.rel (0) target = $region5
    $region4: #{tpu_custom_call.1} parent=1 // pred_region
      %s13 = ssub.s32 128, 128
      %14 = vsyncadd [#allocation3], %s13
      %s16 = sshll.u32 [#allocation2], 4
      %s17 = int_to_ptr.vmem [resolvable:$true] %s16
      %19 = dma.hbm_to_vmem [thread:$0]  %s0, 128, %s17, [#allocation3]
    $region5: #{tpu_custom_call.1} parent=1 // pred_fallthru
      _
    // Predicated region
    $region6: #{tpu_custom_call.1} parent=1 // pred_check
      _
    $region7: #{tpu_custom_call.1} parent=1 // pred_check_branch
      %21 = sbr.rel (0) target = $region9
    $region8: #{tpu_custom_call.1} parent=1 // pred_region
      %s23 = ssub.s32 256, 256
      %24 = vsyncadd [#allocation6], %s23
      %s25 = sshll.u32 [#allocation5], 4
      %s26 = int_to_ptr.vmem [resolvable:$true] %s25
      %31 = dma.hbm_to_vmem [thread:$0]  %s1, 256, %s26, [#allocation6], 128, 128, 8
    $region9: #{tpu_custom_call.1} parent=1 // pred_fallthru
      _
    // Predicated region
    $region10: #{tpu_custom_call.1} parent=1 // pred_check
      _
    $region11: #{tpu_custom_call.1} parent=1 // pred_check_branch
      %33 = sbr.rel (0) target = $region13
    $region12: #{tpu_custom_call.1} parent=1 // pred_region
      %34 = dma.done [#allocation3], 128
    $region13: #{tpu_custom_call.1} parent=1 // pred_fallthru
      _
    // Predicated region
    $region14: #{tpu_custom_call.1} parent=1 // pred_check
      _
    $region15: #{tpu_custom_call.1} parent=1 // pred_check_branch
      %36 = sbr.rel (0) target = $region17
    $region16: #{tpu_custom_call.1} parent=1 // pred_region
      %37 = dma.done [#allocation6], 256
    $region17: #{tpu_custom_call.1} parent=1 // pred_fallthru
      _
    %v38 = vld [vmem:[#allocation2] sm:$0xff]
    %v39 = vld [vmem:[#allocation5] sm:$0xff]
    %v40 = vld [vmem:[#allocation5 + $0x8] sm:$0xff]
    %vm41 = vcmask 130048
    %v43 = vsel %vm41, %v38, 0
    %45 = vmatprep.subr.mxu0 0.0
    %46 = vmatpush1.msra.mxu0 %v39
    %47 = vmatprep.subr.mxu0 0.0
    %48 = vmatpush1.msra.mxu0 %v40
    %49 = vmatprep.subr.mxu0 0.0
    %50 = vmatpush1.msra.mxu0 0.0
    %51 = vmatprep.subr.mxu0 0.0
    %52 = vmatpush1.msra.mxu0 0.0
    %53 = vmatprep.subr.mxu0 0.0
    %54 = vmatpush1.msra.mxu0 0.0
    %55 = vmatprep.subr.mxu0 0.0
    %56 = vmatpush1.msra.mxu0 0.0
    %57 = vmatprep.subr.mxu0 0.0
    %58 = vmatpush1.msra.mxu0 0.0
    %59 = vmatprep.subr.mxu0 0.0
    %60 = vmatpush1.msra.mxu0 0.0
    %61 = vmatprep.subr.mxu0 0.0
    %62 = vmatpush1.msra.mxu0 0.0
    %63 = vmatprep.subr.mxu0 0.0
    %64 = vmatpush1.msra.mxu0 0.0
    %65 = vmatprep.subr.mxu0 0.0
    %66 = vmatpush1.msra.mxu0 0.0
    %67 = vmatprep.subr.mxu0 0.0
    %68 = vmatpush1.msra.mxu0 0.0
    %69 = vmatprep.subr.mxu0 0.0
    %70 = vmatpush1.msra.mxu0 0.0
    %71 = vmatprep.subr.mxu0 0.0
    %72 = vmatpush1.msra.mxu0 0.0
    %73 = vmatprep.subr.mxu0 0.0
    %74 = vmatpush1.msra.mxu0 0.0
    %75 = vmatprep.subr.mxu0 0.0
    %76 = vmatpush1.msra.mxu0 0.0
    %77 = vmatprep.subr.mxu0 0.0
    %78 = vmatpush1.msra.mxu0 0.0
    %79 = vmatprep.subr.mxu0 0.0
    %80 = vmatpush1.msra.mxu0 0.0
    %81 = vmatprep.subr.mxu0 0.0
    %82 = vmatpush1.msra.mxu0 0.0
    %83 = vmatprep.subr.mxu0 0.0
    %84 = vmatpush1.msra.mxu0 0.0
    %85 = vmatprep.subr.mxu0 0.0
    %86 = vmatpush1.msra.mxu0 0.0
    %87 = vmatprep.subr.mxu0 0.0
    %88 = vmatpush1.msra.mxu0 0.0
    %89 = vmatprep.subr.mxu0 0.0
    %90 = vmatpush1.msra.mxu0 0.0
    %91 = vmatprep.subr.mxu0 0.0
    %92 = vmatpush1.msra.mxu0 0.0
    %93 = vmatprep.subr.mxu0 0.0
    %94 = vmatpush1.msra.mxu0 0.0
    %95 = vmatprep.subr.mxu0 0.0
    %96 = vmatpush1.msra.mxu0 0.0
    %97 = vmatprep.subr.mxu0 0.0
    %98 = vmatpush1.msra.mxu0 0.0
    %99 = vmatprep.subr.mxu0 0.0
    %100 = vmatpush1.msra.mxu0 0.0
    %101 = vmatprep.subr.mxu0 0.0
    %102 = vmatpush1.msra.mxu0 0.0
    %103 = vmatprep.subr.mxu0 0.0
    %104 = vmatpush1.msra.mxu0 0.0
    %105 = vmatprep.subr.mxu0 0.0
    %106 = vmatpush1.msra.mxu0 0.0
    %107 = vmatprep.subr.mxu0 0.0
    %108 = vmatpush1.msra.mxu0 0.0
    %109 = vmatprep.mubr.f32.mxu0 0.0
    %110 = vmatmul.mubr.f32.gmra.mrb[0].mxu0 %v43
    %v111 = vpop.f32.mrb[0].mxu0
    %v112 = vadd.f32 0.0, %v111
    %v113 = vpop.f32.mrb[0].mxu0
    %114 = vdwg.mxu0
    %vm115 = vcmask 261120
    %116 = vst.msk [vmem:[#allocation7] sm:$0xff] %vm115, %v112
    // Predicated region
    $region18: #{tpu_custom_call.1} parent=1 // pred_check
      _
    $region19: #{tpu_custom_call.1} parent=1 // pred_check_branch
      %118 = sbr.rel (0) target = $region21
    $region20: #{tpu_custom_call.1} parent=1 // pred_region
      %s120 = ssub.s32 128, 128
      %121 = vsyncadd [#allocation4], %s120
      %s123 = sshll.u32 [#allocation7], 4
      %s124 = int_to_ptr.vmem [resolvable:$true] %s123
      %126 = dma.vmem_to_hbm [thread:$0]  %s124, 128, %s2, [#allocation4]
    $region21: #{tpu_custom_call.1} parent=1 // pred_fallthru
      _
    // Predicated region
    $region22: #{tpu_custom_call.1} parent=1 // pred_check
      _
    $region23: #{tpu_custom_call.1} parent=1 // pred_check_branch
      %128 = sbr.rel (0) target = $region25
    $region24: #{tpu_custom_call.1} parent=1 // pred_region
      %129 = dma.done [#allocation4], 128
    $region25: #{tpu_custom_call.1} parent=1 // pred_fallthru
      _
    %130 = vsyncpa [#allocation3], 1
    %131 = vsyncpa [#allocation6], 1
    %132 = vsyncpa [#allocation4], 1

</llo_original>
